<compile_context>
chip_gen: v5e
topology: v5e:2x2
jax: 0.10.0
libtpu: 0.0.40
codegen_flags: <defaults>
</compile_context>

<pallas_src>
import functools

import jax
import jax.numpy as jnp
from jax.experimental import pallas as pl
from jax.experimental.pallas import tpu as pltpu

LANE = 128
SUBLANE = 8


def _round_up(x, m):
    return (x + m - 1) // m * m


def _cdiv(a, b):
    return (a + b - 1) // b


_ACTIVATIONS = {
    "tanh": jnp.tanh,
    "relu": lambda x: jnp.maximum(x, 0.0),
    "sigmoid": jax.nn.sigmoid,
    "LeakyReLU": lambda x: jax.nn.leaky_relu(x, negative_slope=0.01),
}


def _ffnn_kernel(x_ref, w_ref, b_ref, o_ref, *, n_layers, in_dim, out_dim, act):
    # x_ref: (tm, in_dim) f32   w_ref: (L, F, F) bf16   b_ref: (L, 1, F) f32
    # o_ref: (tm, out_dim) f32
    act_fn = _ACTIVATIONS[act]

    # Input layer: contract the un-padded x block against the first in_dim rows
    # of the (zero-padded) first-layer weight.  bf16 operands, f32 accumulation.
    h = jnp.dot(
        x_ref[...].astype(w_ref.dtype),
        w_ref[0, :in_dim, :],
        preferred_element_type=jnp.float32,
    ) + b_ref[0]

    # Hidden layers + output layer (static unroll: layer count is small/static).
    for layer in range(1, n_layers):
        h = act_fn(h)  # activation on the previous (input/hidden) layer only
        h = jnp.dot(
            h.astype(w_ref.dtype),
            w_ref[layer],
            preferred_element_type=jnp.float32,
        ) + b_ref[layer]

    # Only the first out_dim columns of the last (padded) layer are real.
    o_ref[...] = h[:, :out_dim].astype(o_ref.dtype)


def init_ffnn_params(key, input_dimension, output_dimension, n_hidden_layers,
                     neurons, dtype=jnp.float32):
    """PyTorch nn.Linear default init (uniform +/- 1/sqrt(fan_in)); weights kept
    in PyTorch (out_features, in_features) convention."""
    params = []
    dims = ([(input_dimension, neurons)]
            + [(neurons, neurons)] * (n_hidden_layers - 1)
            + [(neurons, output_dimension)])
    for (fan_in, fan_out) in dims:
        key, kw, kb = jax.random.split(key, 3)
        bound = 1.0 / jnp.sqrt(jnp.asarray(fan_in, dtype))
        w = jax.random.uniform(kw, (fan_out, fan_in), dtype, -bound, bound)
        b = jax.random.uniform(kb, (fan_out,), dtype, -bound, bound)
        params.append((w, b))
    return params


def pack_ffnn_params(params, weight_dtype=jnp.bfloat16, bias_dtype=jnp.float32):
    """One-time packing: transpose W to (in, out), zero-pad to a common
    lane-aligned width F, stack into (L, F, F) weights (bf16 for single-pass
    MXU) and (L, 1, F) f32 biases.  Zero padding is mathematically exact."""
    in_dim = params[0][0].shape[1]
    widths = [in_dim] + [w.shape[0] for (w, _) in params]
    F = _round_up(max(widths), LANE)
    wts, bs = [], []
    for (w, b) in params:
        wt = jnp.transpose(w).astype(weight_dtype)                     # (in, out)
        wt = jnp.pad(wt, ((0, F - wt.shape[0]), (0, F - wt.shape[1])))
        bp = jnp.pad(b.astype(bias_dtype), (0, F - b.shape[0])).reshape(1, F)
        wts.append(wt)
        bs.append(bp)
    return jnp.stack(wts), jnp.stack(bs)


@functools.partial(jax.jit, static_argnames=("out_dim", "activation", "tile_m"))
def ffnn_forward(wt_stack, b_stack, x, *, out_dim, activation="tanh", tile_m=2048):
    """Fused forward: act(... act(x @ W0^T + b0) ...) @ W_last^T + b_last."""
    M, K = x.shape
    L, F, _ = wt_stack.shape

    # Batch tiling:
    #  * big tile (default 2048) to amortise per-grid-step overhead,
    #  * clamped so large batches still yield >= 2 grid steps (v7x: 2 TCs),
    #  * tail block may be partial (grid = cdiv); safe, no cross-row reduction.
    tm = min(tile_m, _round_up(_cdiv(M, 2), SUBLANE))
    if tm >= M:
        tm = M                      # single full-extent block (always legal)
    grid = _cdiv(M, tm)

    wbytes = jnp.dtype(wt_stack.dtype).itemsize
    xbytes = jnp.dtype(x.dtype).itemsize
    obytes = jnp.dtype(x.dtype).itemsize

    # Scoped-VMEM budget: double-buffered x/out tiles, the resident weight/bias
    # stack (2 pipeline buffers), plus headroom for live f32 activations/spill.
    vmem_est = (2 * tm * K * xbytes
                + 2 * tm * out_dim * obytes
                + 2 * L * F * F * wbytes
                + 2 * L * F * 4
                + 4 * tm * F * 4)
    vmem_limit = int(min(100 * 1024 * 1024, max(2 * vmem_est, 16 * 1024 * 1024)))

    flops = 2 * M * (K * F + (L - 1) * F * F)
    transcendentals = M * F * (L - 1)
    bytes_accessed = (M * K * xbytes + M * out_dim * obytes
                      + L * F * F * wbytes + L * F * 4)

    kernel = functools.partial(_ffnn_kernel, n_layers=L, in_dim=K,
                               out_dim=out_dim, act=activation)
    out = pl.pallas_call(
        kernel,
        out_shape=jax.ShapeDtypeStruct((M, out_dim), x.dtype),
        grid=(grid,),
        in_specs=[
            pl.BlockSpec((tm, K), lambda i: (i, 0)),        # x tile (true width K)
            pl.BlockSpec((L, F, F), lambda i: (0, 0, 0)),   # all weights, VMEM-resident
            pl.BlockSpec((L, 1, F), lambda i: (0, 0, 0)),   # all biases, VMEM-resident
        ],
        out_specs=pl.BlockSpec((tm, out_dim), lambda i: (i, 0)),
        compiler_params=pltpu.CompilerParams(
            dimension_semantics=("parallel",),              # shard batch across v7x TCs
            vmem_limit_bytes=vmem_limit,
        ),
        cost_estimate=pl.CostEstimate(
            flops=flops,
            transcendentals=transcendentals,
            bytes_accessed=bytes_accessed,
        ),
    )(x, wt_stack, b_stack)

    return out


if __name__ == "__main__":
    # Small shapes consistent with the module's forward: x is [batch, input_dim]
    batch = 8
    input_dimension = 4
    output_dimension = 2
    n_hidden_layers = 3
    neurons = 32

    key = jax.random.PRNGKey(0)
    key, kx = jax.random.split(key)
    x = jax.random.normal(kx, (batch, input_dimension), dtype=jnp.float32)

    params = init_ffnn_params(key, input_dimension, output_dimension,
                              n_hidden_layers, neurons)
    wt_stack, b_stack = pack_ffnn_params(params)   # bf16 weights, f32 biases

    out = ffnn_forward(wt_stack, b_stack, x, out_dim=output_dimension)
    out = jax.block_until_ready(out)

    # Pure-JAX f32 reference of the same forward semantics (PyTorch-layout params).
    def ref_forward(params, x):
        h = jnp.tanh(x @ params[0][0].T + params[0][1])
        for (w, b) in params[1:-1]:
            h = jnp.tanh(h @ w.T + b)
        return h @ params[-1][0].T + params[-1][1]

    ref = ref_forward(params, x)
    assert out.shape == (batch, output_dimension)
    # bf16 matmul operands (f32 accumulation) vs. pure-f32 reference -> loose tol.
    assert jnp.allclose(out, ref, atol=2e-2, rtol=2e-2), (
        f"max abs err {jnp.max(jnp.abs(out - ref))}")

    print("KERNEL_OK")
</pallas_src>

<mosaic_0001>
module attributes {stable_mosaic.version = 11 : i64} {
  func.func @_ffnn_kernel(%arg0: i32, %arg1: memref<8x4xf32, #tpu.memory_space<vmem>>, %arg2: memref<4x128x128xbf16, #tpu.memory_space<vmem>>, %arg3: memref<4x1x128xf32, #tpu.memory_space<vmem>>, %arg4: memref<8x2xf32, #tpu.memory_space<vmem>>) attributes {dimension_semantics = [#tpu.dimension_semantics<parallel>], iteration_bounds = array<i64: 1>, scalar_prefetch = 0 : i64, scratch_operands = 0 : i64, tpu.core_type = #tpu.core_type<tc>, window_params = [{transform_indices = @transform_0, window_bounds = array<i64: 8, 4>}, {pipeline_mode = #tpu.pipeline_mode<synchronous>, transform_indices = @transform_1, window_bounds = array<i64: 4, 128, 128>}, {pipeline_mode = #tpu.pipeline_mode<synchronous>, transform_indices = @transform_2, window_bounds = array<i64: 4, 1, 128>}, {transform_indices = @transform_3, window_bounds = array<i64: 8, 2>}]} {
    %c0 = arith.constant 0 : index
    %c0_0 = arith.constant 0 : index
    %0 = vector.load %arg1[%c0, %c0_0] : memref<8x4xf32, #tpu.memory_space<vmem>>, vector<8x4xf32>
    %1 = arith.truncf %0 : vector<8x4xf32> to vector<8x4xbf16>
    %c0_1 = arith.constant 0 : index
    %c0_2 = arith.constant 0 : index
    %c0_3 = arith.constant 0 : index
    %2 = vector.load %arg2[%c0_1, %c0_2, %c0_3] : memref<4x128x128xbf16, #tpu.memory_space<vmem>>, vector<1x4x128xbf16>
    %3 = vector.shape_cast %2 : vector<1x4x128xbf16> to vector<4x128xbf16>
    %cst = arith.constant dense<0.000000e+00> : vector<8x128xf32>
    %4 = tpu.matmul %1, %3, %cst {dimension_numbers = #tpu.dot_dimension_numbers<[1], [0], [0], [1], [0, 0, 1, 1], [], []>} : vector<8x4xbf16>, vector<4x128xbf16>, vector<8x128xf32> -> vector<8x128xf32>
    %c0_4 = arith.constant 0 : index
    %c0_5 = arith.constant 0 : index
    %c0_6 = arith.constant 0 : index
    %5 = vector.load %arg3[%c0_4, %c0_5, %c0_6] : memref<4x1x128xf32, #tpu.memory_space<vmem>>, vector<1x1x128xf32>
    %6 = vector.shape_cast %5 : vector<1x1x128xf32> to vector<1x128xf32>
    %7 = vector.broadcast %6 : vector<1x128xf32> to vector<8x128xf32>
    %8 = arith.addf %4, %7 : vector<8x128xf32>
    %9 = math.tanh %8 : vector<8x128xf32>
    %10 = arith.truncf %9 : vector<8x128xf32> to vector<8x128xbf16>
    %c1 = arith.constant 1 : index
    %c0_7 = arith.constant 0 : index
    %c0_8 = arith.constant 0 : index
    %11 = vector.load %arg2[%c1, %c0_7, %c0_8] : memref<4x128x128xbf16, #tpu.memory_space<vmem>>, vector<1x128x128xbf16>
    %12 = vector.shape_cast %11 : vector<1x128x128xbf16> to vector<128x128xbf16>
    %cst_9 = arith.constant dense<0.000000e+00> : vector<8x128xf32>
    %13 = tpu.matmul %10, %12, %cst_9 {dimension_numbers = #tpu.dot_dimension_numbers<[1], [0], [0], [1], [0, 0, 1, 1], [], []>} : vector<8x128xbf16>, vector<128x128xbf16>, vector<8x128xf32> -> vector<8x128xf32>
    %c1_10 = arith.constant 1 : index
    %c0_11 = arith.constant 0 : index
    %c0_12 = arith.constant 0 : index
    %14 = vector.load %arg3[%c1_10, %c0_11, %c0_12] : memref<4x1x128xf32, #tpu.memory_space<vmem>>, vector<1x1x128xf32>
    %15 = vector.shape_cast %14 : vector<1x1x128xf32> to vector<1x128xf32>
    %16 = vector.broadcast %15 : vector<1x128xf32> to vector<8x128xf32>
    %17 = arith.addf %13, %16 : vector<8x128xf32>
    %18 = math.tanh %17 : vector<8x128xf32>
    %19 = arith.truncf %18 : vector<8x128xf32> to vector<8x128xbf16>
    %c2 = arith.constant 2 : index
    %c0_13 = arith.constant 0 : index
    %c0_14 = arith.constant 0 : index
    %20 = vector.load %arg2[%c2, %c0_13, %c0_14] : memref<4x128x128xbf16, #tpu.memory_space<vmem>>, vector<1x128x128xbf16>
    %21 = vector.shape_cast %20 : vector<1x128x128xbf16> to vector<128x128xbf16>
    %cst_15 = arith.constant dense<0.000000e+00> : vector<8x128xf32>
    %22 = tpu.matmul %19, %21, %cst_15 {dimension_numbers = #tpu.dot_dimension_numbers<[1], [0], [0], [1], [0, 0, 1, 1], [], []>} : vector<8x128xbf16>, vector<128x128xbf16>, vector<8x128xf32> -> vector<8x128xf32>
    %c2_16 = arith.constant 2 : index
    %c0_17 = arith.constant 0 : index
    %c0_18 = arith.constant 0 : index
    %23 = vector.load %arg3[%c2_16, %c0_17, %c0_18] : memref<4x1x128xf32, #tpu.memory_space<vmem>>, vector<1x1x128xf32>
    %24 = vector.shape_cast %23 : vector<1x1x128xf32> to vector<1x128xf32>
    %25 = vector.broadcast %24 : vector<1x128xf32> to vector<8x128xf32>
    %26 = arith.addf %22, %25 : vector<8x128xf32>
    %27 = math.tanh %26 : vector<8x128xf32>
    %28 = arith.truncf %27 : vector<8x128xf32> to vector<8x128xbf16>
    %c3 = arith.constant 3 : index
    %c0_19 = arith.constant 0 : index
    %c0_20 = arith.constant 0 : index
    %29 = vector.load %arg2[%c3, %c0_19, %c0_20] : memref<4x128x128xbf16, #tpu.memory_space<vmem>>, vector<1x128x128xbf16>
    %30 = vector.shape_cast %29 : vector<1x128x128xbf16> to vector<128x128xbf16>
    %cst_21 = arith.constant dense<0.000000e+00> : vector<8x128xf32>
    %31 = tpu.matmul %28, %30, %cst_21 {dimension_numbers = #tpu.dot_dimension_numbers<[1], [0], [0], [1], [0, 0, 1, 1], [], []>} : vector<8x128xbf16>, vector<128x128xbf16>, vector<8x128xf32> -> vector<8x128xf32>
    %c3_22 = arith.constant 3 : index
    %c0_23 = arith.constant 0 : index
    %c0_24 = arith.constant 0 : index
    %32 = vector.load %arg3[%c3_22, %c0_23, %c0_24] : memref<4x1x128xf32, #tpu.memory_space<vmem>>, vector<1x1x128xf32>
    %33 = vector.shape_cast %32 : vector<1x1x128xf32> to vector<1x128xf32>
    %34 = vector.broadcast %33 : vector<1x128xf32> to vector<8x128xf32>
    %35 = arith.addf %31, %34 : vector<8x128xf32>
    %36 = vector.extract_strided_slice %35 {offsets = [0, 0], sizes = [8, 2], strides = [1, 1]} : vector<8x128xf32> to vector<8x2xf32>
    %c0_25 = arith.constant 0 : index
    %c0_26 = arith.constant 0 : index
    %37 = vector.load %arg4[%c0_25, %c0_26] : memref<8x2xf32, #tpu.memory_space<vmem>>, vector<8x2xf32>
    tpu.vector_store %arg4[%c0_25, %c0_26], %36 {strides = array<i32>} : memref<8x2xf32, #tpu.memory_space<vmem>>, vector<8x2xf32>,
    return
  }
  func.func @transform_0(%arg0: i32) -> (i32, i32) {
    %c0_i32 = arith.constant 0 : i32
    %c0_i32_0 = arith.constant 0 : i32
    return %arg0, %c0_i32 : i32, i32
  }
  func.func @transform_1(%arg0: i32) -> (i32, i32, i32) {
    %c0_i32 = arith.constant 0 : i32
    %c0_i32_0 = arith.constant 0 : i32
    %c0_i32_1 = arith.constant 0 : i32
    %c0_i32_2 = arith.constant 0 : i32
    return %c0_i32, %c0_i32_0, %c0_i32_1 : i32, i32, i32
  }
  func.func @transform_2(%arg0: i32) -> (i32, i32, i32) {
    %c0_i32 = arith.constant 0 : i32
    %c0_i32_0 = arith.constant 0 : i32
    %c0_i32_1 = arith.constant 0 : i32
    %c0_i32_2 = arith.constant 0 : i32
    return %c0_i32, %c0_i32_0, %c0_i32_1 : i32, i32, i32
  }
  func.func @transform_3(%arg0: i32) -> (i32, i32) {
    %c0_i32 = arith.constant 0 : i32
    %c0_i32_0 = arith.constant 0 : i32
    return %arg0, %c0_i32 : i32, i32
  }
}

</mosaic_0001>

<llo_original>
// kernel: ffnn_forward.1
$region0: #{ffnn_forward.1}
  #allocation0 [shape = 'u32[]', space=smem, size = 0x4, offset = 0x4, fixed_abs, tag = 'smem constant byte address 0x4 - core index']
  #allocation1 [shape = 'u32[72,128]{1,0:T(1,128)}', space=vmem, size = 0x9000, scoped, tag = 'internal scratch']
  %s0 = inlined_call_operand.vmem [shape: f32[8,4], index: 0, kind: input, shape index: {}]
  %s1 = inlined_call_operand.hbm [shape: bf16[4,128,128], index: 1, kind: input, shape index: {}]
  %s2 = inlined_call_operand.vmem [shape: f32[4,1,128], index: 2, kind: input, shape index: {}]
  %s3 = inlined_call_operand.vmem [shape: f32[8,2], index: 3, kind: output, shape index: {}]
  %s4 = sld [smem:[#allocation0]]
  $region26: #{ffnn_forward.1} parent=0
    _
  %s6 = ssub.s32 1, %s4
  %s7 = scalar_select 0, %s6, %s4
  $region1: #{ffnn_forward.1} parent=0
    #allocation2 [shape = 'u8[131072]{0}', space=vmem, size = 0x20000, scoped, tag = 'input window, operand 1, single buffered']
    #allocation3 [shape = 's32[1]{0}', space=sflag, size = 0x4, scoped, tag = 'scoped memory for ffnn_forward.1']
    %8 = vsyncpa [#allocation3], 0
    // Predicated region
    $region2: #{ffnn_forward.1} parent=1 // pred_check
      _
    $region3: #{ffnn_forward.1} parent=1 // pred_check_branch
      %10 = sbr.rel (0) target = $region5
    $region4: #{ffnn_forward.1} parent=1 // pred_region
      _
    $region5: #{ffnn_forward.1} parent=1 // pred_fallthru
      _
    // Predicated region
    $region6: #{ffnn_forward.1} parent=1 // pred_check
      _
    $region7: #{ffnn_forward.1} parent=1 // pred_check_branch
      %12 = sbr.rel (0) target = $region9
    $region8: #{ffnn_forward.1} parent=1 // pred_region
      %14 = vsyncadd [#allocation3], 0
      %s15 = sshll.u32 %s1, 4
      %s16 = int_to_ptr.hbm [resolvable:$true] %s15
      %s17 = sshll.u32 [#allocation2], 4
      %s18 = int_to_ptr.vmem [resolvable:$true] %s17
      %23 = dma.hbm_to_vmem [thread:$0]  %s16, 4096, %s18, [#allocation3], 64, 64, 4
    $region9: #{ffnn_forward.1} parent=1 // pred_fallthru
      _
    // Predicated region
    $region10: #{ffnn_forward.1} parent=1 // pred_check
      _
    $region11: #{ffnn_forward.1} parent=1 // pred_check_branch
      %25 = sbr.rel (0) target = $region13
    $region12: #{ffnn_forward.1} parent=1 // pred_region
      _
    $region13: #{ffnn_forward.1} parent=1 // pred_fallthru
      _
    // Predicated region
    $region14: #{ffnn_forward.1} parent=1 // pred_check
      _
    $region15: #{ffnn_forward.1} parent=1 // pred_check_branch
      %27 = sbr.rel (0) target = $region17
    $region16: #{ffnn_forward.1} parent=1 // pred_region
      %29 = dma.done [#allocation3], 4096
    $region17: #{ffnn_forward.1} parent=1 // pred_fallthru
      _
    %v31 = vld [vmem:[%s0] sm:$0xff]
    %v32 = vpack.c.bf16 %v31, %v31
    %v33 = vld [vmem:[#allocation2] sm:$0x3]
    %v34 = vld [vmem:[%s2] sm:$0x1]
    %v36 = vperm.slane %v34, 0
    %vm38 = vcmask 31744
    %v40 = vsel %vm38, %v32, 0
    %vm42 = vcmask 1041408
    %v44 = vsel %vm42, %v33, 0
    %46 = vmatpush.bf16.msra.mxu0 0
    %47 = vmatpush.bf16.msra.mxu0 0
    %48 = vmatpush.bf16.msra.mxu0 0
    %49 = vmatpush.bf16.msra.mxu0 0
    %50 = vmatpush.bf16.msra.mxu0 0
    %51 = vmatpush.bf16.msra.mxu0 0
    %52 = vmatpush.bf16.msra.mxu0 0
    %53 = vmatpush.bf16.msra.mxu0 %v44
    %54 = vmatmul.bf16.gmra.mxu0 %v40
    %v55 = vpop.f32.mrf.mxu0
    %v56 = vadd.f32 %v36, %v55
    %v57 = vpop.f32.mrf.mxu0
    %58 = vdwg.mxu0
    %v59 = vtanh.pop %v56
    %v60 = vpack.c.bf16 %v59, %v59
    %s61 = scalar_lea.vmem [#allocation2], 64
    %v62 = vld [vmem:[%s61] sm:$0xf]
    %v63 = vld [vmem:[%s61 + $0x4] sm:$0xf]
    %v64 = vld [vmem:[%s61 + $0x8] sm:$0xf]
    %v65 = vld [vmem:[%s61 + $0xc] sm:$0xf]
    %v66 = vld [vmem:[%s61 + $0x10] sm:$0xf]
    %v67 = vld [vmem:[%s61 + $0x14] sm:$0xf]
    %v68 = vld [vmem:[%s61 + $0x18] sm:$0xf]
    %v69 = vld [vmem:[%s61 + $0x1c] sm:$0xf]
    %v70 = vld [vmem:[%s61 + $0x20] sm:$0xf]
    %v71 = vld [vmem:[%s61 + $0x24] sm:$0xf]
    %v72 = vld [vmem:[%s61 + $0x28] sm:$0xf]
    %v73 = vld [vmem:[%s61 + $0x2c] sm:$0xf]
    %v74 = vld [vmem:[%s61 + $0x30] sm:$0xf]
    %v75 = vld [vmem:[%s61 + $0x34] sm:$0xf]
    %v76 = vld [vmem:[%s61 + $0x38] sm:$0xf]
    %v77 = vld [vmem:[%s61 + $0x3c] sm:$0xf]
    %s78 = scalar_lea.vmem %s2, 1
    %v79 = vld [vmem:[%s78] sm:$0x1]
    %v81 = vperm.slane %v79, 0
    %v99 = vunpack.c.l.b16 %v62
    %v100 = vunpack.c.l.b16 %v63
    %v101 = vunpack.c.l.b16 %v64
    %v102 = vunpack.c.l.b16 %v65
    %v103 = vunpack.c.l.b16 %v66
    %v104 = vunpack.c.l.b16 %v67
    %v105 = vunpack.c.l.b16 %v68
    %v106 = vunpack.c.l.b16 %v69
    %v107 = vunpack.c.l.b16 %v70
    %v108 = vunpack.c.l.b16 %v71
    %v109 = vunpack.c.l.b16 %v72
    %v110 = vunpack.c.l.b16 %v73
    %v111 = vunpack.c.l.b16 %v74
    %v112 = vunpack.c.l.b16 %v75
    %v113 = vunpack.c.l.b16 %v76
    %v114 = vunpack.c.l.b16 %v77
    %v115 = vpack.c.b16 %v100, %v99
    %v116 = vpack.c.b16 %v102, %v101
    %v117 = vpack.c.b16 %v104, %v103
    %v118 = vpack.c.b16 %v106, %v105
    %v119 = vpack.c.b16 %v108, %v107
    %v120 = vpack.c.b16 %v110, %v109
    %v121 = vpack.c.b16 %v112, %v111
    %v122 = vpack.c.b16 %v114, %v113
    %131 = vmatpush.bf16.msra.mxu0 %v122
    %132 = vmatpush.bf16.msra.mxu0 %v121
    %133 = vmatpush.bf16.msra.mxu0 %v120
    %134 = vmatpush.bf16.msra.mxu0 %v119
    %135 = vmatpush.bf16.msra.mxu0 %v118
    %136 = vmatpush.bf16.msra.mxu0 %v117
    %137 = vmatpush.bf16.msra.mxu0 %v116
    %138 = vmatpush.bf16.msra.mxu0 %v115
    %139 = vmatmul.bf16.gmra.mxu0 %v60
    %v140 = vpop.f32.mrf.mxu0
    %v141 = vadd.f32 %v81, %v140
    %v142 = vpop.f32.mrf.mxu0
    %143 = vdwg.mxu0
    %v144 = vtanh.pop %v141
    %v145 = vpack.c.bf16 %v144, %v144
    %s146 = scalar_lea.vmem [#allocation2], 128
    %v147 = vld [vmem:[%s146] sm:$0xf]
    %v148 = vld [vmem:[%s146 + $0x4] sm:$0xf]
    %v149 = vld [vmem:[%s146 + $0x8] sm:$0xf]
    %v150 = vld [vmem:[%s146 + $0xc] sm:$0xf]
    %v151 = vld [vmem:[%s146 + $0x10] sm:$0xf]
    %v152 = vld [vmem:[%s146 + $0x14] sm:$0xf]
    %v153 = vld [vmem:[%s146 + $0x18] sm:$0xf]
    %v154 = vld [vmem:[%s146 + $0x1c] sm:$0xf]
    %v155 = vld [vmem:[%s146 + $0x20] sm:$0xf]
    %v156 = vld [vmem:[%s146 + $0x24] sm:$0xf]
    %v157 = vld [vmem:[%s146 + $0x28] sm:$0xf]
    %v158 = vld [vmem:[%s146 + $0x2c] sm:$0xf]
    %v159 = vld [vmem:[%s146 + $0x30] sm:$0xf]
    %v160 = vld [vmem:[%s146 + $0x34] sm:$0xf]
    %v161 = vld [vmem:[%s146 + $0x38] sm:$0xf]
    %v162 = vld [vmem:[%s146 + $0x3c] sm:$0xf]
    %s163 = scalar_lea.vmem %s2, 2
    %v164 = vld [vmem:[%s163] sm:$0x1]
    %v166 = vperm.slane %v164, 0
    %v184 = vunpack.c.l.b16 %v147
    %v185 = vunpack.c.l.b16 %v148
    %v186 = vunpack.c.l.b16 %v149
    %v187 = vunpack.c.l.b16 %v150
    %v188 = vunpack.c.l.b16 %v151
    %v189 = vunpack.c.l.b16 %v152
    %v190 = vunpack.c.l.b16 %v153
    %v191 = vunpack.c.l.b16 %v154
    %v192 = vunpack.c.l.b16 %v155
    %v193 = vunpack.c.l.b16 %v156
    %v194 = vunpack.c.l.b16 %v157
    %v195 = vunpack.c.l.b16 %v158
    %v196 = vunpack.c.l.b16 %v159
    %v197 = vunpack.c.l.b16 %v160
    %v198 = vunpack.c.l.b16 %v161
    %v199 = vunpack.c.l.b16 %v162
    %v200 = vpack.c.b16 %v185, %v184
    %v201 = vpack.c.b16 %v187, %v186
    %v202 = vpack.c.b16 %v189, %v188
    %v203 = vpack.c.b16 %v191, %v190
    %v204 = vpack.c.b16 %v193, %v192
    %v205 = vpack.c.b16 %v195, %v194
    %v206 = vpack.c.b16 %v197, %v196
    %v207 = vpack.c.b16 %v199, %v198
    %216 = vmatpush.bf16.msra.mxu0 %v207
    %217 = vmatpush.bf16.msra.mxu0 %v206
    %218 = vmatpush.bf16.msra.mxu0 %v205
    %219 = vmatpush.bf16.msra.mxu0 %v204
    %220 = vmatpush.bf16.msra.mxu0 %v203
    %221 = vmatpush.bf16.msra.mxu0 %v202
    %222 = vmatpush.bf16.msra.mxu0 %v201
    %223 = vmatpush.bf16.msra.mxu0 %v200
    %224 = vmatmul.bf16.gmra.mxu0 %v145
    %v225 = vpop.f32.mrf.mxu0
    %v226 = vadd.f32 %v166, %v225
    %v227 = vpop.f32.mrf.mxu0
    %228 = vdwg.mxu0
    %v229 = vtanh.pop %v226
    %v230 = vpack.c.bf16 %v229, %v229
    %s231 = scalar_lea.vmem [#allocation2], 192
    %v232 = vld [vmem:[%s231] sm:$0xf]
    %v233 = vld [vmem:[%s231 + $0x4] sm:$0xf]
    %v234 = vld [vmem:[%s231 + $0x8] sm:$0xf]
    %v235 = vld [vmem:[%s231 + $0xc] sm:$0xf]
    %v236 = vld [vmem:[%s231 + $0x10] sm:$0xf]
    %v237 = vld [vmem:[%s231 + $0x14] sm:$0xf]
    %v238 = vld [vmem:[%s231 + $0x18] sm:$0xf]
    %v239 = vld [vmem:[%s231 + $0x1c] sm:$0xf]
    %v240 = vld [vmem:[%s231 + $0x20] sm:$0xf]
    %v241 = vld [vmem:[%s231 + $0x24] sm:$0xf]
    %v242 = vld [vmem:[%s231 + $0x28] sm:$0xf]
    %v243 = vld [vmem:[%s231 + $0x2c] sm:$0xf]
    %v244 = vld [vmem:[%s231 + $0x30] sm:$0xf]
    %v245 = vld [vmem:[%s231 + $0x34] sm:$0xf]
    %v246 = vld [vmem:[%s231 + $0x38] sm:$0xf]
    %v247 = vld [vmem:[%s231 + $0x3c] sm:$0xf]
    %s248 = scalar_lea.vmem %s2, 3
    %v249 = vld [vmem:[%s248] sm:$0x1]
    %v251 = vperm.slane %v249, 0
    %v269 = vunpack.c.l.b16 %v232
    %v270 = vunpack.c.l.b16 %v233
    %v271 = vunpack.c.l.b16 %v234
    %v272 = vunpack.c.l.b16 %v235
    %v273 = vunpack.c.l.b16 %v236
    %v274 = vunpack.c.l.b16 %v237
    %v275 = vunpack.c.l.b16 %v238
    %v276 = vunpack.c.l.b16 %v239
    %v277 = vunpack.c.l.b16 %v240
    %v278 = vunpack.c.l.b16 %v241
    %v279 = vunpack.c.l.b16 %v242
    %v280 = vunpack.c.l.b16 %v243
    %v281 = vunpack.c.l.b16 %v244
    %v282 = vunpack.c.l.b16 %v245
    %v283 = vunpack.c.l.b16 %v246
    %v284 = vunpack.c.l.b16 %v247
    %v285 = vpack.c.b16 %v270, %v269
    %v286 = vpack.c.b16 %v272, %v271
    %v287 = vpack.c.b16 %v274, %v273
    %v288 = vpack.c.b16 %v276, %v275
    %v289 = vpack.c.b16 %v278, %v277
    %v290 = vpack.c.b16 %v280, %v279
    %v291 = vpack.c.b16 %v282, %v281
    %v292 = vpack.c.b16 %v284, %v283
    %301 = vmatpush.bf16.msra.mxu0 %v292
    %302 = vmatpush.bf16.msra.mxu0 %v291
    %303 = vmatpush.bf16.msra.mxu0 %v290
    %304 = vmatpush.bf16.msra.mxu0 %v289
    %305 = vmatpush.bf16.msra.mxu0 %v288
    %306 = vmatpush.bf16.msra.mxu0 %v287
    %307 = vmatpush.bf16.msra.mxu0 %v286
    %308 = vmatpush.bf16.msra.mxu0 %v285
    %309 = vmatmul.bf16.gmra.mxu0 %v230
    %v310 = vpop.f32.mrf.mxu0
    %v311 = vadd.f32 %v251, %v310
    %v312 = vpop.f32.mrf.mxu0
    %313 = vdwg.mxu0
    %vm314 = vcmask 15360
    %315 = vst.msk [vmem:[%s3] sm:$0xff] %vm314, %v311
    // Predicated region
    $region18: #{ffnn_forward.1} parent=1 // pred_check
      _
    $region19: #{ffnn_forward.1} parent=1 // pred_check_branch
      %317 = sbr.rel (0) target = $region21
    $region20: #{ffnn_forward.1} parent=1 // pred_region
      _
    $region21: #{ffnn_forward.1} parent=1 // pred_fallthru
      _
    // Predicated region
    $region22: #{ffnn_forward.1} parent=1 // pred_check
      _
    $region23: #{ffnn_forward.1} parent=1 // pred_check_branch
      %319 = sbr.rel (0) target = $region25
    $region24: #{ffnn_forward.1} parent=1 // pred_region
      _
    $region25: #{ffnn_forward.1} parent=1 // pred_fallthru
      _
    %320 = vsyncpa [#allocation3], 1

</llo_original>
